<compile_context>
chip_gen: v7x
topology: tpu7x:2x2x1
jax: 0.10.0
libtpu: 0.0.40
codegen_flags: <defaults>
</compile_context>

<pallas_src>
import math

import jax
import jax.numpy as jnp
from jax.experimental import pallas as pl
from jax.experimental.pallas import tpu as pltpu

_LANE = 128
_TARGET_TILE_BYTES = 2 << 20   # ~2 MiB x-tile: past the measured ~85%-roofline knee,
                               # amortizes the ~0.35 us/step overhead (esp. on v7x).
_MAX_TILE_COLS = 32768         # cap on the lane tile so the shared pe tile stays small
_SPLIT_BYTES = 2 << 20         # force >=2 grid blocks above this (v7x has 2 TCs)
_VMEM_LIMIT_BYTES = 32 * 1024 * 1024  # within physical VMEM on every generation


def _add_pe_kernel(x_ref, pe_ref, o_ref):
    # Memory-bound hot path: (tb, tn) x-tile + (1, tn) pe-tile, broadcast over rows.
    o_ref[...] = x_ref[...] + pe_ref[...]


def make_positional_encoding(embed_dim: int, max_len: int = 100,
                             dtype=jnp.float32) -> jnp.ndarray:
    """PyTorch-equivalent pe table, pre-cast and pre-flattened to (1, max_len*embed_dim)
    so the forward pass does zero wrapper-side slicing/casting."""
    assert embed_dim % 2 == 0, "embed_dim must be even to match PyTorch's interleave"
    position = jnp.arange(0, max_len, dtype=jnp.float32)[:, None]              # (L, 1)
    div_term = jnp.exp(
        jnp.arange(0, embed_dim, 2, dtype=jnp.float32)
        * (-math.log(10000.0) / embed_dim)
    )                                                                          # (E//2,)
    angles = position * div_term                                               # (L, E//2)
    # interleave: pe[:, 0::2] = sin, pe[:, 1::2] = cos
    pe = jnp.stack([jnp.sin(angles), jnp.cos(angles)], axis=-1).reshape(max_len, embed_dim)
    return pe.reshape(1, max_len * embed_dim).astype(dtype)                    # (1, L*E)


def _sublane(itemsize: int) -> int:
    # A packed vreg holds 32 // itemsize sublane rows: 8 f32, 16 bf16, 32 int8/fp8.
    # Full-register row tiles keep loads/stores full-width (vst, not vst.msk).
    return max(8, 32 // itemsize)


def _choose_tiles(B: int, F: int, itemsize: int):
    """(row_tile, col_tile) obeying the (sublane, 128) block rules, sized so one
    x-tile is ~_TARGET_TILE_BYTES, and split so any non-tiny input produces >=2
    grid blocks (keeps both v7x TensorCores busy; harmless on v5e/v6e)."""
    sub = _sublane(itemsize)

    # Column tile: largest lane-aligned width <= F (capped), or the full
    # (unaligned) width for tiny F -- full-extent blocks are always legal.
    lane_cols = (F // _LANE) * _LANE
    tn = min(lane_cols, _MAX_TILE_COLS) if lane_cols else F

    # Row tile: fill the byte target, rounded down to a sublane multiple.
    rows = max(sub, (_TARGET_TILE_BYTES // (tn * itemsize)) // sub * sub)
    tb = B if B <= rows else rows            # either full dim, or a sublane multiple

    # v7x: 2 TensorCores per chip -- never leave one idle on a sizeable input.
    if (pl.cdiv(B, tb) * pl.cdiv(F, tn) == 1) and (B * F * itemsize >= _SPLIT_BYTES):
        if tb >= 2 * sub:
            tb = (pl.cdiv(tb, 2) // sub) * sub
        elif tn >= 2 * _LANE:
            tn = (pl.cdiv(tn, 2) // _LANE) * _LANE
    return tb, tn


def positional_encoding_forward(x: jnp.ndarray, pe_flat: jnp.ndarray,
                                *, force_pallas: bool = False) -> jnp.ndarray:
    """x: (B, S, E); pe_flat: (1, max_len*E), pre-cast to x.dtype.
    Returns x + pe[:, :S] (broadcast over batch)."""
    B, S, E = x.shape
    F = S * E
    assert F <= pe_flat.shape[1], "sequence length exceeds max_len of the pe table"
    assert pe_flat.dtype == x.dtype, (
        "pre-cast pe_flat to x.dtype at init via make_positional_encoding(dtype=...) "
        "so the forward pass stays cast-free")

    itemsize = jnp.dtype(x.dtype).itemsize

    # Tiny inputs: pallas_call launch + per-step overhead dwarfs the bytes moved;
    # XLA's fused broadcast-add is strictly faster below ~1 MiB.
    if not force_pallas and B * F * itemsize < (1 << 20):
        return x + jax.lax.slice(pe_flat, (0, 0), (1, F)).reshape(1, S, E)

    tb, tn = _choose_tiles(B, F, itemsize)

    x2 = x.reshape(B, F)                     # contiguous -> free reshape

    if tn % _LANE == 0:
        # Lane-aligned tile: the BlockSpec windows the *full* pe table directly --
        # no per-call wrapper slice/cast writing a fresh HBM array.  The trailing
        # column block (when F % tn != 0) reads pe columns beyond S*E; those lanes
        # are never stored to the output, so it is harmless (keep it that way).
        pe_in = pe_flat
    else:
        # Rare corner (F < 128): a non-lane-aligned block must equal the array's
        # full last dim, so slice pe down to (1, F) once here.
        pe_in = jax.lax.slice(pe_flat, (0, 0), (1, F))

    # Column blocks outermost, row blocks innermost: the pe block index (0, j) is
    # constant across consecutive inner steps, so Pallas skips its re-DMA instead
    # of refetching the pe tile B/tb times.
    grid = (pl.cdiv(F, tn), pl.cdiv(B, tb))

    out = pl.pallas_call(
        _add_pe_kernel,
        out_shape=jax.ShapeDtypeStruct((B, F), x.dtype),
        grid_spec=pltpu.PrefetchScalarGridSpec(
            num_scalar_prefetch=0,
            grid=grid,
            in_specs=[
                pl.BlockSpec((tb, tn), lambda j, i: (i, j)),   # x tile
                pl.BlockSpec((1, tn), lambda j, i: (0, j)),    # pe tile, reused across i
            ],
            out_specs=pl.BlockSpec((tb, tn), lambda j, i: (i, j)),
        ),
        compiler_params=pltpu.CompilerParams(
            # No reduction axis -> both grid dims shard across v7x's 2 TCs.
            dimension_semantics=("parallel", "parallel"),
            # ~8.5 MiB double-buffered footprint at 2 MiB tiles; 32 MiB gives
            # headroom over v5e's 16 MiB scoped default and is within every
            # generation's physical VMEM (v7x: 64 MiB).
            vmem_limit_bytes=_VMEM_LIMIT_BYTES,
        ),
    )(x2, pe_in)

    return out.reshape(B, S, E)


if __name__ == "__main__":
    B, S, E = 2, 8, 32
    max_len = 100

    key = jax.random.PRNGKey(0)
    x = jax.random.normal(key, (B, S, E), dtype=jnp.float32)

    pe_flat = make_positional_encoding(E, max_len, dtype=x.dtype)

    # force_pallas=True so the Pallas path is exercised even at this toy size.
    out = positional_encoding_forward(x, pe_flat, force_pallas=True)
    out = jax.block_until_ready(out)

    # Pure-JAX reference check (matches the PyTorch module's forward).
    ref = x + pe_flat[:, :S * E].reshape(1, S, E)
    assert out.shape == (B, S, E)
    assert jnp.allclose(out, ref, atol=1e-6), "mismatch vs reference"

    print("KERNEL_OK")
</pallas_src>

<mosaic_0001>
module attributes {stable_mosaic.version = 11 : i64} {
  func.func @_add_pe_kernel(%arg0: i32, %arg1: i32, %arg2: memref<2x256xf32, #tpu.memory_space<vmem>>, %arg3: memref<1x256xf32, #tpu.memory_space<vmem>>, %arg4: memref<2x256xf32, #tpu.memory_space<vmem>>) attributes {dimension_semantics = [#tpu.dimension_semantics<parallel>, #tpu.dimension_semantics<parallel>], iteration_bounds = array<i64: 1, 1>, scalar_prefetch = 0 : i64, scratch_operands = 0 : i64, tpu.core_type = #tpu.core_type<tc>, window_params = [{transform_indices = @transform_0, window_bounds = array<i64: 2, 256>}, {transform_indices = @transform_1, window_bounds = array<i64: 1, 256>}, {transform_indices = @transform_2, window_bounds = array<i64: 2, 256>}]} {
    %c0 = arith.constant 0 : index
    %c0_0 = arith.constant 0 : index
    %0 = vector.load %arg2[%c0, %c0_0] : memref<2x256xf32, #tpu.memory_space<vmem>>, vector<2x256xf32>
    %c0_1 = arith.constant 0 : index
    %c0_2 = arith.constant 0 : index
    %1 = vector.load %arg3[%c0_1, %c0_2] : memref<1x256xf32, #tpu.memory_space<vmem>>, vector<1x256xf32>
    %2 = vector.broadcast %1 : vector<1x256xf32> to vector<2x256xf32>
    %3 = arith.addf %0, %2 : vector<2x256xf32>
    %c0_3 = arith.constant 0 : index
    %c0_4 = arith.constant 0 : index
    %4 = vector.load %arg4[%c0_3, %c0_4] : memref<2x256xf32, #tpu.memory_space<vmem>>, vector<2x256xf32>
    tpu.vector_store %arg4[%c0_3, %c0_4], %3 {strides = array<i32>} : memref<2x256xf32, #tpu.memory_space<vmem>>, vector<2x256xf32>,
    return
  }
  func.func @transform_0(%arg0: i32, %arg1: i32) -> (i32, i32) {
    %c0_i32 = arith.constant 0 : i32
    return %arg1, %arg0 : i32, i32
  }
  func.func @transform_1(%arg0: i32, %arg1: i32) -> (i32, i32) {
    %c0_i32 = arith.constant 0 : i32
    %c0_i32_0 = arith.constant 0 : i32
    return %c0_i32, %arg0 : i32, i32
  }
  func.func @transform_2(%arg0: i32, %arg1: i32) -> (i32, i32) {
    %c0_i32 = arith.constant 0 : i32
    return %arg1, %arg0 : i32, i32
  }
}

</mosaic_0001>

<llo_original>
// kernel: tpu_custom_call.1
$region0: #{tpu_custom_call.1}
  #allocation0 [shape = 'u32[]', space=smem, size = 0x4, offset = 0x4, fixed_abs, tag = 'smem constant byte address 0x4 - core index']
  #allocation1 [shape = 'u32[144,128]{1,0:T(1,128)}', space=vmem, size = 0x12000, scoped, tag = 'internal scratch']
  %s0 = inlined_call_operand.hbm [shape: f32[2,256], index: 0, kind: input, shape index: {}]
  %s1 = inlined_call_operand.hbm [shape: f32[1,3200], index: 1, kind: input, shape index: {}]
  %s2 = inlined_call_operand.hbm [shape: f32[2,256], index: 2, kind: output, shape index: {}]
  %s3 = sld [smem:[#allocation0]]
  $region26: #{tpu_custom_call.1} parent=0
    _
  %s5 = ssub.s32 1, %s3
  %s6 = scalar_select 0, %s5, %s3
  $region1: #{tpu_custom_call.1} parent=0
    #allocation2 [shape = 'u8[2048]{0}', space=vmem, size = 0x800, scoped, tag = 'input window, operand 0, single buffered']
    #allocation3 [shape = 's32[1]{0}', space=sflag, size = 0x4, scoped, tag = 'scoped memory for tpu_custom_call.1']
    #allocation4 [shape = 's32[1]{0}', space=sflag, size = 0x4, scoped, tag = 'scoped memory for tpu_custom_call.1']
    #allocation5 [shape = 'u8[1024]{0}', space=vmem, size = 0x400, scoped, tag = 'input window, operand 1, single buffered']
    #allocation6 [shape = 's32[1]{0}', space=sflag, size = 0x4, scoped, tag = 'scoped memory for tpu_custom_call.1']
    #allocation7 [shape = 'u8[2048]{0}', space=vmem, size = 0x800, scoped, tag = 'output window, operand 0, single buffered']
    %7 = vsyncpa [#allocation3], 0
    %8 = vsyncpa [#allocation6], 0
    %9 = vsyncpa [#allocation4], 0
    // Predicated region
    $region2: #{tpu_custom_call.1} parent=1 // pred_check
      _
    $region3: #{tpu_custom_call.1} parent=1 // pred_check_branch
      %11 = sbr.rel (0) target = $region5
    $region4: #{tpu_custom_call.1} parent=1 // pred_region
      %s13 = ssub.s32 64, 64
      %14 = vsyncadd [#allocation3], %s13
      %s16 = sshll.u32 [#allocation2], 4
      %s17 = int_to_ptr.vmem [resolvable:$true] %s16
      %19 = dma.hbm_to_vmem [thread:$0]  %s0, 64, %s17, [#allocation3]
    $region5: #{tpu_custom_call.1} parent=1 // pred_fallthru
      _
    // Predicated region
    $region6: #{tpu_custom_call.1} parent=1 // pred_check
      _
    $region7: #{tpu_custom_call.1} parent=1 // pred_check_branch
      %21 = sbr.rel (0) target = $region9
    $region8: #{tpu_custom_call.1} parent=1 // pred_region
      %s23 = ssub.s32 32, 32
      %24 = vsyncadd [#allocation6], %s23
      %s26 = sshll.u32 [#allocation5], 4
      %s27 = int_to_ptr.vmem [resolvable:$true] %s26
      %29 = dma.hbm_to_vmem [thread:$0]  %s1, 32, %s27, [#allocation6]
    $region9: #{tpu_custom_call.1} parent=1 // pred_fallthru
      _
    // Predicated region
    $region10: #{tpu_custom_call.1} parent=1 // pred_check
      _
    $region11: #{tpu_custom_call.1} parent=1 // pred_check_branch
      %31 = sbr.rel (0) target = $region13
    $region12: #{tpu_custom_call.1} parent=1 // pred_region
      %32 = dma.done [#allocation3], 64
    $region13: #{tpu_custom_call.1} parent=1 // pred_fallthru
      _
    // Predicated region
    $region14: #{tpu_custom_call.1} parent=1 // pred_check
      _
    $region15: #{tpu_custom_call.1} parent=1 // pred_check_branch
      %34 = sbr.rel (0) target = $region17
    $region16: #{tpu_custom_call.1} parent=1 // pred_region
      %35 = dma.done [#allocation6], 32
    $region17: #{tpu_custom_call.1} parent=1 // pred_fallthru
      _
    %v36 = vld [vmem:[#allocation2] sm:$0xf]
    %v37 = vld [vmem:[#allocation5] sm:$0x3]
    %v39 = vlaneseq
    %v40 = vshrl.u32 %v39, 7
    %v41 = vsub.s32 0, %v40
    %v42 = vrot.slane %v37, %v41
    %v43 = vlaneseq
    %v44 = vshrl.u32 %v43, 7
    %v45 = vsub.s32 1, %v44
    %v46 = vrot.slane %v37, %v45
    %v47 = vcombine.low %v42, %v46
    %v49 = vunpack.c.l.s4 1983009808
    %v50 = vunpack.c.0.s8 %v49
    %v51 = vlaneseq
    %v52 = vshrl.u32 %v51, 7
    %v53 = vsub.s32 %v50, %v52
    %v54 = vrot.slane %v47, %v53
    %v56 = vadd.f32 %v36, %v54
    %57 = vst [vmem:[#allocation7] sm:$0xf] %v56
    // Predicated region
    $region18: #{tpu_custom_call.1} parent=1 // pred_check
      _
    $region19: #{tpu_custom_call.1} parent=1 // pred_check_branch
      %59 = sbr.rel (0) target = $region21
    $region20: #{tpu_custom_call.1} parent=1 // pred_region
      %s61 = ssub.s32 64, 64
      %62 = vsyncadd [#allocation4], %s61
      %s64 = sshll.u32 [#allocation7], 4
      %s65 = int_to_ptr.vmem [resolvable:$true] %s64
      %67 = dma.vmem_to_hbm [thread:$0]  %s65, 64, %s2, [#allocation4]
    $region21: #{tpu_custom_call.1} parent=1 // pred_fallthru
      _
    // Predicated region
    $region22: #{tpu_custom_call.1} parent=1 // pred_check
      _
    $region23: #{tpu_custom_call.1} parent=1 // pred_check_branch
      %69 = sbr.rel (0) target = $region25
    $region24: #{tpu_custom_call.1} parent=1 // pred_region
      %70 = dma.done [#allocation4], 64
    $region25: #{tpu_custom_call.1} parent=1 // pred_fallthru
      _
    %71 = vsyncpa [#allocation3], 1
    %72 = vsyncpa [#allocation6], 1
    %73 = vsyncpa [#allocation4], 1

</llo_original>
